<compile_context>
chip_gen: v5e
topology: v5e:2x2
jax: 0.10.0
libtpu: 0.0.40
codegen_flags: <defaults>
</compile_context>

<pallas_src>
import math

import jax
import jax.numpy as jnp
from jax.experimental import pallas as pl
from jax.experimental.pallas import tpu as pltpu

_HIDDEN = 28  # matches nn.Linear(input_size, 28)


def _round_up(x: int, m: int) -> int:
    return ((x + m - 1) // m) * m


def _qnet_kernel(x_ref, w1_ref, b1_ref, w2_ref, b2_ref, out_ref):
    # fc1 on the MXU (f32 in, f32 accumulation), bias + ReLU on the VPU.
    h = jnp.dot(x_ref[...], w1_ref[...], preferred_element_type=jnp.float32)
    h = jnp.maximum(h + b1_ref[...], 0.0)
    # fc2 on the MXU; unpadded (out_f-wide) store -- masked vst is fully hidden
    # under the HBM DMA in this memory-bound regime.
    y = jnp.dot(h, w2_ref[...], preferred_element_type=jnp.float32)
    out_ref[...] = (y + b2_ref[...]).astype(out_ref.dtype)


def prepare_params(w1, b1, w2, b2):
    """One-time (init-time) param prep: pad hidden 28 -> 32 (sublane granule).

    Exact: padded b1 entries are 0, ReLU(0)=0, padded w2 rows are 0.
    w1: (in_f, H) -> (in_f, H_p); b1: (1, H) -> (1, H_p);
    w2: (H, out_f) -> (H_p, out_f); b2: (1, out_f) unchanged. All f32.
    """
    in_f, H = w1.shape
    out_f = w2.shape[1]
    H_p = _round_up(H, 8)  # 28 -> 32
    w1_p = jnp.zeros((in_f, H_p), jnp.float32).at[:, :H].set(w1.astype(jnp.float32))
    b1_p = jnp.zeros((1, H_p), jnp.float32).at[:, :H].set(b1.astype(jnp.float32))
    w2_p = jnp.zeros((H_p, out_f), jnp.float32).at[:H, :].set(w2.astype(jnp.float32))
    b2_p = b2.astype(jnp.float32).reshape(1, out_f)
    return w1_p, b1_p, w2_p, b2_p


def qnetwork_forward(x, w1_p, b1_p, w2_p, b2_p, *,
                     block_b: int = 2048, small_batch_threshold: int = 64):
    """x: (B, in_f) f32; params are the *prepared* (padded) f32 params.

    Returns float32 (B, out_f), matching torch: fc2(relu(fc1(x))).
    """
    B, in_f = x.shape
    H_p = w1_p.shape[1]
    out_f = w2_p.shape[1]
    x = x.astype(jnp.float32)

    # Fast path for single-step / tiny-batch inference: pallas launch overhead
    # would dominate, a fused XLA dot is faster.
    if B <= small_batch_threshold:
        h = jnp.maximum(jnp.dot(x, w1_p) + b1_p, 0.0)
        return jnp.dot(h, w2_p) + b2_p

    # Batch tile: multiple of 8 (sublane granule), capped near B. Ragged last
    # block handled by Pallas (OOB output writes dropped; rows independent).
    TB = min(_round_up(block_b, 8), _round_up(B, 8))
    grid = (pl.cdiv(B, TB),)

    return pl.pallas_call(
        _qnet_kernel,
        out_shape=jax.ShapeDtypeStruct((B, out_f), jnp.float32),
        grid=grid,
        in_specs=[
            pl.BlockSpec((TB, in_f), lambda i: (i, 0)),    # x: tiled over batch
            pl.BlockSpec((in_f, H_p), lambda i: (0, 0)),   # w1: VMEM-resident
            pl.BlockSpec((1, H_p), lambda i: (0, 0)),      # b1: VMEM-resident
            pl.BlockSpec((H_p, out_f), lambda i: (0, 0)),  # w2: VMEM-resident
            pl.BlockSpec((1, out_f), lambda i: (0, 0)),    # b2: VMEM-resident
        ],
        out_specs=pl.BlockSpec((TB, out_f), lambda i: (i, 0)),
        compiler_params=pltpu.CompilerParams(
            dimension_semantics=("parallel",)),  # megacore sharding on v7x
    )(x, w1_p, b1_p, w2_p, b2_p)


def init_qnetwork_params(key, input_size, output_size, hidden=_HIDDEN,
                         dtype=jnp.float32):
    """PyTorch nn.Linear default init: U(-1/sqrt(fan_in), 1/sqrt(fan_in)).
    Weights stored pre-transposed as (in_features, out_features)."""
    k1, k2, k3, k4 = jax.random.split(key, 4)
    bound1 = 1.0 / math.sqrt(input_size)
    bound2 = 1.0 / math.sqrt(hidden)
    w1 = jax.random.uniform(k1, (input_size, hidden), dtype, -bound1, bound1)
    b1 = jax.random.uniform(k2, (1, hidden), dtype, -bound1, bound1)
    w2 = jax.random.uniform(k3, (hidden, output_size), dtype, -bound2, bound2)
    b2 = jax.random.uniform(k4, (1, output_size), dtype, -bound2, bound2)
    return w1, b1, w2, b2


def qnetwork_ref(x, w1, b1, w2, b2):
    """Pure-JAX f32 reference on the *unpadded* params."""
    h = jnp.maximum(jnp.dot(x, w1) + b1, 0.0)
    return jnp.dot(h, w2) + b2


if __name__ == "__main__":
    key = jax.random.PRNGKey(0)
    k_params, k_x1, k_x2 = jax.random.split(key, 3)

    input_size = 16   # e.g. state vector size
    output_size = 4   # e.g. number of discrete actions

    w1, b1, w2, b2 = init_qnetwork_params(k_params, input_size, output_size)
    params = prepare_params(w1, b1, w2, b2)   # one-time pad (28 -> 32), f32

    # Small batch (typical single-step inference) -> fast XLA path.
    x_small = jax.random.normal(k_x1, (8, input_size), dtype=jnp.float32)
    # Larger, non-tile-multiple batch -> Pallas path with a multi-step grid and
    # a ragged last block (block_b=512 => 3 grid steps, last block 26/512 valid).
    x_big = jax.random.normal(k_x2, (1050, input_size), dtype=jnp.float32)

    out_small = jax.block_until_ready(qnetwork_forward(x_small, *params))
    out_big = jax.block_until_ready(qnetwork_forward(x_big, *params, block_b=512))

    assert out_small.shape == (x_small.shape[0], output_size)
    assert out_big.shape == (x_big.shape[0], output_size)

    ref_small = qnetwork_ref(x_small, w1, b1, w2, b2)
    ref_big = qnetwork_ref(x_big, w1, b1, w2, b2)
    assert jnp.allclose(out_small, ref_small, atol=1e-5, rtol=1e-5), "small mismatch"
    assert jnp.allclose(out_big, ref_big, atol=1e-5, rtol=1e-5), "big mismatch"

    print("KERNEL_OK")
</pallas_src>

<mosaic_0001>
module attributes {stable_mosaic.version = 11 : i64} {
  func.func @_qnet_kernel(%arg0: i32, %arg1: memref<512x16xf32, #tpu.memory_space<vmem>>, %arg2: memref<16x32xf32, #tpu.memory_space<vmem>>, %arg3: memref<1x32xf32, #tpu.memory_space<vmem>>, %arg4: memref<32x4xf32, #tpu.memory_space<vmem>>, %arg5: memref<1x4xf32, #tpu.memory_space<vmem>>, %arg6: memref<512x4xf32, #tpu.memory_space<vmem>>) attributes {dimension_semantics = [#tpu.dimension_semantics<parallel>], iteration_bounds = array<i64: 3>, scalar_prefetch = 0 : i64, scratch_operands = 0 : i64, tpu.core_type = #tpu.core_type<tc>, window_params = [{transform_indices = @transform_0, window_bounds = array<i64: 512, 16>}, {pipeline_mode = #tpu.pipeline_mode<synchronous>, transform_indices = @transform_1, window_bounds = array<i64: 16, 32>}, {pipeline_mode = #tpu.pipeline_mode<synchronous>, transform_indices = @transform_2, window_bounds = array<i64: 1, 32>}, {pipeline_mode = #tpu.pipeline_mode<synchronous>, transform_indices = @transform_3, window_bounds = array<i64: 32, 4>}, {pipeline_mode = #tpu.pipeline_mode<synchronous>, transform_indices = @transform_4, window_bounds = array<i64: 1, 4>}, {transform_indices = @transform_5, window_bounds = array<i64: 512, 4>}]} {
    %c0 = arith.constant 0 : index
    %c0_0 = arith.constant 0 : index
    %0 = vector.load %arg1[%c0, %c0_0] : memref<512x16xf32, #tpu.memory_space<vmem>>, vector<512x16xf32>
    %c0_1 = arith.constant 0 : index
    %c0_2 = arith.constant 0 : index
    %1 = vector.load %arg2[%c0_1, %c0_2] : memref<16x32xf32, #tpu.memory_space<vmem>>, vector<16x32xf32>
    %cst = arith.constant dense<0.000000e+00> : vector<512x32xf32>
    %2 = tpu.matmul %0, %1, %cst {dimension_numbers = #tpu.dot_dimension_numbers<[1], [0], [0], [1], [0, 0, 1, 1], [], []>} : vector<512x16xf32>, vector<16x32xf32>, vector<512x32xf32> -> vector<512x32xf32>
    %c0_3 = arith.constant 0 : index
    %c0_4 = arith.constant 0 : index
    %3 = vector.load %arg3[%c0_3, %c0_4] : memref<1x32xf32, #tpu.memory_space<vmem>>, vector<1x32xf32>
    %4 = vector.broadcast %3 : vector<1x32xf32> to vector<512x32xf32>
    %5 = arith.addf %2, %4 : vector<512x32xf32>
    %cst_5 = arith.constant 0.000000e+00 : f32
    %6 = vector.broadcast %cst_5 : f32 to vector<512x32xf32>
    %7 = arith.maximumf %5, %6 : vector<512x32xf32>
    %c0_6 = arith.constant 0 : index
    %c0_7 = arith.constant 0 : index
    %8 = vector.load %arg4[%c0_6, %c0_7] : memref<32x4xf32, #tpu.memory_space<vmem>>, vector<32x4xf32>
    %cst_8 = arith.constant dense<0.000000e+00> : vector<512x4xf32>
    %9 = tpu.matmul %7, %8, %cst_8 {dimension_numbers = #tpu.dot_dimension_numbers<[1], [0], [0], [1], [0, 0, 1, 1], [], []>} : vector<512x32xf32>, vector<32x4xf32>, vector<512x4xf32> -> vector<512x4xf32>
    %c0_9 = arith.constant 0 : index
    %c0_10 = arith.constant 0 : index
    %10 = vector.load %arg5[%c0_9, %c0_10] : memref<1x4xf32, #tpu.memory_space<vmem>>, vector<1x4xf32>
    %11 = vector.broadcast %10 : vector<1x4xf32> to vector<512x4xf32>
    %12 = arith.addf %9, %11 : vector<512x4xf32>
    %c0_11 = arith.constant 0 : index
    %c0_12 = arith.constant 0 : index
    %13 = vector.load %arg6[%c0_11, %c0_12] : memref<512x4xf32, #tpu.memory_space<vmem>>, vector<512x4xf32>
    tpu.vector_store %arg6[%c0_11, %c0_12], %12 {strides = array<i32>} : memref<512x4xf32, #tpu.memory_space<vmem>>, vector<512x4xf32>,
    return
  }
  func.func @transform_0(%arg0: i32) -> (i32, i32) {
    %c0_i32 = arith.constant 0 : i32
    %c0_i32_0 = arith.constant 0 : i32
    return %arg0, %c0_i32 : i32, i32
  }
  func.func @transform_1(%arg0: i32) -> (i32, i32) {
    %c0_i32 = arith.constant 0 : i32
    %c0_i32_0 = arith.constant 0 : i32
    %c0_i32_1 = arith.constant 0 : i32
    return %c0_i32, %c0_i32_0 : i32, i32
  }
  func.func @transform_2(%arg0: i32) -> (i32, i32) {
    %c0_i32 = arith.constant 0 : i32
    %c0_i32_0 = arith.constant 0 : i32
    %c0_i32_1 = arith.constant 0 : i32
    return %c0_i32, %c0_i32_0 : i32, i32
  }
  func.func @transform_3(%arg0: i32) -> (i32, i32) {
    %c0_i32 = arith.constant 0 : i32
    %c0_i32_0 = arith.constant 0 : i32
    %c0_i32_1 = arith.constant 0 : i32
    return %c0_i32, %c0_i32_0 : i32, i32
  }
  func.func @transform_4(%arg0: i32) -> (i32, i32) {
    %c0_i32 = arith.constant 0 : i32
    %c0_i32_0 = arith.constant 0 : i32
    %c0_i32_1 = arith.constant 0 : i32
    return %c0_i32, %c0_i32_0 : i32, i32
  }
  func.func @transform_5(%arg0: i32) -> (i32, i32) {
    %c0_i32 = arith.constant 0 : i32
    %c0_i32_0 = arith.constant 0 : i32
    return %arg0, %c0_i32 : i32, i32
  }
}

</mosaic_0001>

<llo_original>
// kernel: tpu_custom_call.1
$region0: #{tpu_custom_call.1}
  #allocation0 [shape = 'u32[]', space=smem, size = 0x4, offset = 0x4, fixed_abs, tag = 'smem constant byte address 0x4 - core index']
  #allocation1 [shape = 'u32[72,128]{1,0:T(1,128)}', space=vmem, size = 0x9000, scoped, tag = 'internal scratch']
  %s0 = inlined_call_operand.vmem [shape: f32[1050,16], index: 0, kind: input, shape index: {}]
  %s1 = inlined_call_operand.vmem [shape: f32[16,32], index: 1, kind: input, shape index: {}]
  %s2 = inlined_call_operand.vmem [shape: f32[1,32], index: 2, kind: input, shape index: {}]
  %s3 = inlined_call_operand.vmem [shape: f32[32,4], index: 3, kind: input, shape index: {}]
  %s4 = inlined_call_operand.vmem [shape: f32[1,4], index: 4, kind: input, shape index: {}]
  %s5 = inlined_call_operand.vmem [shape: f32[1050,4], index: 5, kind: output, shape index: {}]
  %s6 = sld [smem:[#allocation0]]
  $region101: #{tpu_custom_call.1} parent=0
    _
  %s8 = ssub.s32 1, %s6
  %s9 = scalar_select 0, %s8, %s6
  $region1: #{tpu_custom_call.1} parent=0
    #allocation2 [shape = 'u8[524288]{0}', space=vmem, size = 0x80000, scoped, tag = 'output window, operand 0']
    loop: start=0, step=1, limit=5
    $region2: #{tpu_custom_call.1} parent=1 // loop_pre_header
      _
    $region3: #{tpu_custom_call.1} parent=1 // loop_header
      %s11 = sphi 0, %s15
      %p12 = scmp.ge.s32.totalorder %s11, 5
      %s21 = sphi 0, %s23
      %s24 = sphi 0, %s21
      %s25 = sphi 0, %s24
      %s41 = sphi 0, %s25
      %s45 = sphi 0, %s45
      %s47 = sphi 0, %s45
      %s48 = sphi 0, %s47
      %s62 = sphi 0, %s48
      %s66 = sphi 0, %s66
      %s68 = sphi 0, %s66
      %s69 = sphi 0, %s68
      %s83 = sphi 0, %s69
      %s87 = sphi 0, %s87
      %s89 = sphi 0, %s87
      %s90 = sphi 0, %s89
      %s104 = sphi 0, %s90
      %s108 = sphi 0, %s108
      %s110 = sphi 0, %s108
      %s111 = sphi 0, %s110
      %s125 = sphi 0, %s111
      %s131 = sphi 0, %s133
      %s134 = sphi 0, %s131
      %s135 = sphi 0, %s134
      %s151 = sphi 0, %s135
    $region4: #{tpu_custom_call.1} parent=1 // loop_header_branch
      %14 = sbr.rel (%p12) target = $region8
    $region5: #{tpu_custom_call.1} parent=1 // loop_body
      %s16 = ssub.s32 %s11, 1
      %s17 = ssub.s32 %s11, 2
      %s18 = sadd.s32 %s11, 1
      %s19 = ssub.s32 %s11, %s18
      %p20 = scmp.eq.s32.totalorder %s19, 0
      %s22 = sadd.s32 %s21, 1
      %s23 = scalar_select %p20, %s21, %s22
      %p26 = pneg %p20
      %p27 = scmp.eq.s32.totalorder %s11, 2
      %p28 = por %p26, %p27
      %p29 = scmp.ne.s32.totalorder %s21, %s24
      %p30 = scmp.eq.s32.totalorder %s11, 0
      %p31 = por %p29, %p30
      %p32 = scmp.ne.s32.totalorder %s21, %s24
      %p33 = scmp.eq.s32.totalorder %s16, 2
      %p34 = por %p32, %p33
      %p35 = scmp.ne.s32.totalorder %s24, %s25
      %p36 = scmp.eq.s32.totalorder %s16, 0
      %p37 = por %p35, %p36
      %p38 = scmp.ne.s32.totalorder %s24, %s25
      %p39 = scmp.eq.s32.totalorder %s17, 2
      %p40 = por %p38, %p39
      %p42 = scmp.ne.s32.totalorder %s25, %s41
      %p43 = scmp.eq.s32.totalorder %s17, 0
      %p44 = por %p42, %p43
      %s46 = sadd.s32 %s45, 1
      %p49 = scmp.eq.s32.totalorder %s11, 2
      %p50 = scmp.ne.s32.totalorder %s45, %s47
      %p51 = scmp.eq.s32.totalorder %s11, 0
      %p52 = por %p50, %p51
      %p53 = scmp.ne.s32.totalorder %s45, %s47
      %p54 = scmp.eq.s32.totalorder %s16, 2
      %p55 = por %p53, %p54
      %p56 = scmp.ne.s32.totalorder %s47, %s48
      %p57 = scmp.eq.s32.totalorder %s16, 0
      %p58 = por %p56, %p57
      %p59 = scmp.ne.s32.totalorder %s47, %s48
      %p60 = scmp.eq.s32.totalorder %s17, 2
      %p61 = por %p59, %p60
      %p63 = scmp.ne.s32.totalorder %s48, %s62
      %p64 = scmp.eq.s32.totalorder %s17, 0
      %p65 = por %p63, %p64
      %s67 = sadd.s32 %s66, 1
      %p70 = scmp.eq.s32.totalorder %s11, 2
      %p71 = scmp.ne.s32.totalorder %s66, %s68
      %p72 = scmp.eq.s32.totalorder %s11, 0
      %p73 = por %p71, %p72
      %p74 = scmp.ne.s32.totalorder %s66, %s68
      %p75 = scmp.eq.s32.totalorder %s16, 2
      %p76 = por %p74, %p75
      %p77 = scmp.ne.s32.totalorder %s68, %s69
      %p78 = scmp.eq.s32.totalorder %s16, 0
      %p79 = por %p77, %p78
      %p80 = scmp.ne.s32.totalorder %s68, %s69
      %p81 = scmp.eq.s32.totalorder %s17, 2
      %p82 = por %p80, %p81
      %p84 = scmp.ne.s32.totalorder %s69, %s83
      %p85 = scmp.eq.s32.totalorder %s17, 0
      %p86 = por %p84, %p85
      %s88 = sadd.s32 %s87, 1
      %p91 = scmp.eq.s32.totalorder %s11, 2
      %p92 = scmp.ne.s32.totalorder %s87, %s89
      %p93 = scmp.eq.s32.totalorder %s11, 0
      %p94 = por %p92, %p93
      %p95 = scmp.ne.s32.totalorder %s87, %s89
      %p96 = scmp.eq.s32.totalorder %s16, 2
      %p97 = por %p95, %p96
      %p98 = scmp.ne.s32.totalorder %s89, %s90
      %p99 = scmp.eq.s32.totalorder %s16, 0
      %p100 = por %p98, %p99
      %p101 = scmp.ne.s32.totalorder %s89, %s90
      %p102 = scmp.eq.s32.totalorder %s17, 2
      %p103 = por %p101, %p102
      %p105 = scmp.ne.s32.totalorder %s90, %s104
      %p106 = scmp.eq.s32.totalorder %s17, 0
      %p107 = por %p105, %p106
      %s109 = sadd.s32 %s108, 1
      %p112 = scmp.eq.s32.totalorder %s11, 2
      %p113 = scmp.ne.s32.totalorder %s108, %s110
      %p114 = scmp.eq.s32.totalorder %s11, 0
      %p115 = por %p113, %p114
      %p116 = scmp.ne.s32.totalorder %s108, %s110
      %p117 = scmp.eq.s32.totalorder %s16, 2
      %p118 = por %p116, %p117
      %p119 = scmp.ne.s32.totalorder %s110, %s111
      %p120 = scmp.eq.s32.totalorder %s16, 0
      %p121 = por %p119, %p120
      %p122 = scmp.ne.s32.totalorder %s110, %s111
      %p123 = scmp.eq.s32.totalorder %s17, 2
      %p124 = por %p122, %p123
      %p126 = scmp.ne.s32.totalorder %s111, %s125
      %p127 = scmp.eq.s32.totalorder %s17, 0
      %p128 = por %p126, %p127
      %s129 = ssub.s32 %s11, %s18
      %p130 = scmp.eq.s32.totalorder %s129, 0
      %s132 = sadd.s32 %s131, 1
      %s133 = scalar_select %p130, %s131, %s132
      %p136 = pneg %p130
      %p137 = scmp.eq.s32.totalorder %s11, 2
      %p138 = por %p136, %p137
      %p139 = scmp.ne.s32.totalorder %s131, %s134
      %p140 = scmp.eq.s32.totalorder %s11, 0
      %p141 = por %p139, %p140
      %p142 = scmp.ne.s32.totalorder %s131, %s134
      %p143 = scmp.eq.s32.totalorder %s16, 2
      %p144 = por %p142, %p143
      %p145 = scmp.ne.s32.totalorder %s134, %s135
      %p146 = scmp.eq.s32.totalorder %s16, 0
      %p147 = por %p145, %p146
      %p148 = scmp.ne.s32.totalorder %s134, %s135
      %p149 = scmp.eq.s32.totalorder %s17, 2
      %p150 = por %p148, %p149
      %p152 = scmp.ne.s32.totalorder %s135, %s151
      %p153 = scmp.eq.s32.totalorder %s17, 0
      %p154 = por %p152, %p153
      %p155 = scmp.le.s32.totalorder 1, %s11
      %p156 = scmp.lt.s32.totalorder %s11, 4
      %p157 = pnand %p155, %p156
      %p158 = pneg %p157
      // Predicated region
      $region9: #{tpu_custom_call.1} parent=5 // pred_check
        _
      $region10: #{tpu_custom_call.1} parent=5 // pred_check_branch
        %160 = sbr.rel (%p157) target = $region12
      $region11: #{tpu_custom_call.1} parent=5 // pred_region
        %s161 = ssub.s32 %s11, 1
        // Predicated region
        $region13: #{tpu_custom_call.1} parent=11 // pred_check
          %p162 = pneg %p58
        $region14: #{tpu_custom_call.1} parent=11 // pred_check_branch
          %164 = sbr.rel (%p162) target = $region16
        $region15: #{tpu_custom_call.1} parent=11 // pred_region
          _
        $region16: #{tpu_custom_call.1} parent=11 // pred_fallthru
          _
        // Predicated region
        $region17: #{tpu_custom_call.1} parent=11 // pred_check
          %p165 = pneg %p79
        $region18: #{tpu_custom_call.1} parent=11 // pred_check_branch
          %167 = sbr.rel (%p165) target = $region20
        $region19: #{tpu_custom_call.1} parent=11 // pred_region
          _
        $region20: #{tpu_custom_call.1} parent=11 // pred_fallthru
          _
        // Predicated region
        $region21: #{tpu_custom_call.1} parent=11 // pred_check
          %p168 = pneg %p100
        $region22: #{tpu_custom_call.1} parent=11 // pred_check_branch
          %170 = sbr.rel (%p168) target = $region24
        $region23: #{tpu_custom_call.1} parent=11 // pred_region
          _
        $region24: #{tpu_custom_call.1} parent=11 // pred_fallthru
          _
        // Predicated region
        $region25: #{tpu_custom_call.1} parent=11 // pred_check
          %p171 = pneg %p121
        $region26: #{tpu_custom_call.1} parent=11 // pred_check_branch
          %173 = sbr.rel (%p171) target = $region28
        $region27: #{tpu_custom_call.1} parent=11 // pred_region
          _
        $region28: #{tpu_custom_call.1} parent=11 // pred_fallthru
          _
      $region12: #{tpu_custom_call.1} parent=5 // pred_fallthru
        _
      %p174 = scmp.lt.s32.totalorder %s11, 3
      // Predicated region
      $region29: #{tpu_custom_call.1} parent=5 // pred_check
        %p175 = pneg %p174
      $region30: #{tpu_custom_call.1} parent=5 // pred_check_branch
        %177 = sbr.rel (%p175) target = $region32
      $region31: #{tpu_custom_call.1} parent=5 // pred_region
        // Predicated region
        $region33: #{tpu_custom_call.1} parent=31 // pred_check
          %p178 = pneg %p31
        $region34: #{tpu_custom_call.1} parent=31 // pred_check_branch
          %180 = sbr.rel (%p178) target = $region36
        $region35: #{tpu_custom_call.1} parent=31 // pred_region
          %s181 = smul.u32 64, %s11
          %s182 = ssub.s32 132, %s181
          %p183 = scmp.lt.s32.totalorder %s182, 64
          %s184 = scalar_select %p183, %s182, 64
          %s185 = smul.u32 8, %s184
          %p186 = scmp.lt.s32.totalorder %s181, 131
          %s187 = scalar_select %p186, %s181, 131
          %s188 = smul.addr %s187, 8
          %s189 = scalar_lea.vmem %s0, %s188
          %s190 = smul.u32 64, %s11
          %s191 = ssub.s32 132, %s190
          %p192 = scmp.lt.s32.totalorder %s191, 64
          %s193 = scalar_select %p192, %s191, 64
          %s194 = smul.u32 8, %s193
        $region36: #{tpu_custom_call.1} parent=31 // pred_fallthru
          _
      $region32: #{tpu_custom_call.1} parent=5 // pred_fallthru
        _
      %p195 = scmp.le.s32.totalorder 1, %s11
      %p196 = scmp.lt.s32.totalorder %s11, 4
      %p197 = pnand %p195, %p196
      %p198 = pneg %p197
      // Predicated region
      $region37: #{tpu_custom_call.1} parent=5 // pred_check
        _
      $region38: #{tpu_custom_call.1} parent=5 // pred_check_branch
        %200 = sbr.rel (%p197) target = $region40
      $region39: #{tpu_custom_call.1} parent=5 // pred_region
        %s201 = ssub.s32 %s11, 1
        %s202 = smul.u32 64, %s16
        %s203 = ssub.s32 132, %s202
        %p204 = scmp.lt.s32.totalorder %s203, 64
        %s205 = scalar_select %p204, %s203, 64
        %s206 = smul.u32 8, %s205
        %p207 = scmp.lt.s32.totalorder %s202, 131
        %s208 = scalar_select %p207, %s202, 131
        %s209 = smul.addr %s208, 8
        %s210 = scalar_lea.vmem %s0, %s209
        %p211 = pneg %p37
        %p212 = pneg %p34
        %p213 = pneg %p58
        %p214 = pneg %p55
        %p215 = pneg %p79
        %p216 = pneg %p76
        %p217 = pneg %p100
        %p218 = pneg %p97
        %p219 = pneg %p121
        %p220 = pneg %p118
        %p221 = pneg %p147
        %p222 = pneg %p144
        %s223 = sand.u32 %s134, 1
        %s224 = sand.u32 %s134, 1
        %s225 = smul.addr %s224, 512
        %s226 = scalar_lea.vmem [#allocation2], %s225
        %s227 = smul.u32 64, %s16
        %s228 = ssub.s32 132, %s227
        %p229 = scmp.lt.s32.totalorder %s228, 64
        %s230 = scalar_select %p229, %s228, 64
        %s231 = smul.u32 8, %s230
        %p232 = scmp.lt.s32.totalorder %s227, 131
        %s233 = scalar_select %p232, %s227, 131
        %s234 = smul.addr %s233, 8
        %s235 = scalar_lea.vmem %s0, %s234
        %s236 = smul.u32 64, %s16
        %s237 = ssub.s32 132, %s236
        %p238 = scmp.lt.s32.totalorder %s237, 64
        %s239 = scalar_select %p238, %s237, 64
        %s240 = smul.u32 8, %s239
        %s241 = smul.u32 64, %s16
        %s242 = ssub.s32 132, %s241
        %p243 = scmp.lt.s32.totalorder %s242, 64
        %s244 = scalar_select %p243, %s242, 64
        %s245 = smul.u32 8, %s244
        %v246 = vld [vmem:[%s235] sm:$0xff]
        %v247 = vld [vmem:[%s235 + $0x8] sm:$0xff]
        %v248 = vld [vmem:[%s235 + $0x10] sm:$0xff]
        %v249 = vld [vmem:[%s235 + $0x18] sm:$0xff]
        %v250 = vld [vmem:[%s235 + $0x20] sm:$0xff]
        %v251 = vld [vmem:[%s235 + $0x28] sm:$0xff]
        %v252 = vld [vmem:[%s235 + $0x30] sm:$0xff]
        %v253 = vld [vmem:[%s235 + $0x38] sm:$0xff]
        %v254 = vld [vmem:[%s235 + $0x40] sm:$0xff]
        %v255 = vld [vmem:[%s235 + $0x48] sm:$0xff]
        %v256 = vld [vmem:[%s235 + $0x50] sm:$0xff]
        %v257 = vld [vmem:[%s235 + $0x58] sm:$0xff]
        %v258 = vld [vmem:[%s235 + $0x60] sm:$0xff]
        %v259 = vld [vmem:[%s235 + $0x68] sm:$0xff]
        %v260 = vld [vmem:[%s235 + $0x70] sm:$0xff]
        %v261 = vld [vmem:[%s235 + $0x78] sm:$0xff]
        %v262 = vld [vmem:[%s235 + $0x80] sm:$0xff]
        %v263 = vld [vmem:[%s235 + $0x88] sm:$0xff]
        %v264 = vld [vmem:[%s235 + $0x90] sm:$0xff]
        %v265 = vld [vmem:[%s235 + $0x98] sm:$0xff]
        %v266 = vld [vmem:[%s235 + $0xa0] sm:$0xff]
        %v267 = vld [vmem:[%s235 + $0xa8] sm:$0xff]
        %v268 = vld [vmem:[%s235 + $0xb0] sm:$0xff]
        %v269 = vld [vmem:[%s235 + $0xb8] sm:$0xff]
        %v270 = vld [vmem:[%s235 + $0xc0] sm:$0xff]
        %v271 = vld [vmem:[%s235 + $0xc8] sm:$0xff]
        %v272 = vld [vmem:[%s235 + $0xd0] sm:$0xff]
        %v273 = vld [vmem:[%s235 + $0xd8] sm:$0xff]
        %v274 = vld [vmem:[%s235 + $0xe0] sm:$0xff]
        %v275 = vld [vmem:[%s235 + $0xe8] sm:$0xff]
        %v276 = vld [vmem:[%s235 + $0xf0] sm:$0xff]
        %v277 = vld [vmem:[%s235 + $0xf8] sm:$0xff]
        %v278 = vld [vmem:[%s235 + $0x100] sm:$0xff]
        %v279 = vld [vmem:[%s235 + $0x108] sm:$0xff]
        %v280 = vld [vmem:[%s235 + $0x110] sm:$0xff]
        %v281 = vld [vmem:[%s235 + $0x118] sm:$0xff]
        %v282 = vld [vmem:[%s235 + $0x120] sm:$0xff]
        %v283 = vld [vmem:[%s235 + $0x128] sm:$0xff]
        %v284 = vld [vmem:[%s235 + $0x130] sm:$0xff]
        %v285 = vld [vmem:[%s235 + $0x138] sm:$0xff]
        %v286 = vld [vmem:[%s235 + $0x140] sm:$0xff]
        %v287 = vld [vmem:[%s235 + $0x148] sm:$0xff]
        %v288 = vld [vmem:[%s235 + $0x150] sm:$0xff]
        %v289 = vld [vmem:[%s235 + $0x158] sm:$0xff]
        %v290 = vld [vmem:[%s235 + $0x160] sm:$0xff]
        %v291 = vld [vmem:[%s235 + $0x168] sm:$0xff]
        %v292 = vld [vmem:[%s235 + $0x170] sm:$0xff]
        %v293 = vld [vmem:[%s235 + $0x178] sm:$0xff]
        %v294 = vld [vmem:[%s235 + $0x180] sm:$0xff]
        %v295 = vld [vmem:[%s235 + $0x188] sm:$0xff]
        %v296 = vld [vmem:[%s235 + $0x190] sm:$0xff]
        %v297 = vld [vmem:[%s235 + $0x198] sm:$0xff]
        %v298 = vld [vmem:[%s235 + $0x1a0] sm:$0xff]
        %v299 = vld [vmem:[%s235 + $0x1a8] sm:$0xff]
        %v300 = vld [vmem:[%s235 + $0x1b0] sm:$0xff]
        %v301 = vld [vmem:[%s235 + $0x1b8] sm:$0xff]
        %v302 = vld [vmem:[%s235 + $0x1c0] sm:$0xff]
        %v303 = vld [vmem:[%s235 + $0x1c8] sm:$0xff]
        %v304 = vld [vmem:[%s235 + $0x1d0] sm:$0xff]
        %v305 = vld [vmem:[%s235 + $0x1d8] sm:$0xff]
        %v306 = vld [vmem:[%s235 + $0x1e0] sm:$0xff]
        %v307 = vld [vmem:[%s235 + $0x1e8] sm:$0xff]
        %v308 = vld [vmem:[%s235 + $0x1f0] sm:$0xff]
        %v309 = vld [vmem:[%s235 + $0x1f8] sm:$0xff]
        %v310 = vld [vmem:[%s1] sm:$0xff]
        %v311 = vld [vmem:[%s1 + $0x8] sm:$0xff]
        %v312 = vld [vmem:[%s2] sm:$0x1]
        %v314 = vperm.slane %v312, 0
        %vm316 = vcmask 130048
        %v318 = vsel %vm316, %v246, 0
        %v321 = vsel %vm316, %v247, 0
        %v324 = vsel %vm316, %v248, 0
        %v327 = vsel %vm316, %v249, 0
        %v330 = vsel %vm316, %v250, 0
        %v333 = vsel %vm316, %v251, 0
        %v336 = vsel %vm316, %v252, 0
        %v339 = vsel %vm316, %v253, 0
        %v342 = vsel %vm316, %v254, 0
        %v345 = vsel %vm316, %v255, 0
        %v348 = vsel %vm316, %v256, 0
        %v351 = vsel %vm316, %v257, 0
        %v354 = vsel %vm316, %v258, 0
        %v357 = vsel %vm316, %v259, 0
        %v360 = vsel %vm316, %v260, 0
        %v363 = vsel %vm316, %v261, 0
        %v366 = vsel %vm316, %v262, 0
        %v369 = vsel %vm316, %v263, 0
        %v372 = vsel %vm316, %v264, 0
        %v375 = vsel %vm316, %v265, 0
        %v378 = vsel %vm316, %v266, 0
        %v381 = vsel %vm316, %v267, 0
        %v384 = vsel %vm316, %v268, 0
        %v387 = vsel %vm316, %v269, 0
        %v390 = vsel %vm316, %v270, 0
        %v393 = vsel %vm316, %v271, 0
        %v396 = vsel %vm316, %v272, 0
        %v399 = vsel %vm316, %v273, 0
        %v402 = vsel %vm316, %v274, 0
        %v405 = vsel %vm316, %v275, 0
        %v408 = vsel %vm316, %v276, 0
        %v411 = vsel %vm316, %v277, 0
        %v414 = vsel %vm316, %v278, 0
        %v417 = vsel %vm316, %v279, 0
        %v420 = vsel %vm316, %v280, 0
        %v423 = vsel %vm316, %v281, 0
        %v426 = vsel %vm316, %v282, 0
        %v429 = vsel %vm316, %v283, 0
        %v432 = vsel %vm316, %v284, 0
        %v435 = vsel %vm316, %v285, 0
        %v438 = vsel %vm316, %v286, 0
        %v441 = vsel %vm316, %v287, 0
        %v444 = vsel %vm316, %v288, 0
        %v447 = vsel %vm316, %v289, 0
        %v450 = vsel %vm316, %v290, 0
        %v453 = vsel %vm316, %v291, 0
        %v456 = vsel %vm316, %v292, 0
        %v459 = vsel %vm316, %v293, 0
        %v462 = vsel %vm316, %v294, 0
        %v465 = vsel %vm316, %v295, 0
        %v468 = vsel %vm316, %v296, 0
        %v471 = vsel %vm316, %v297, 0
        %v474 = vsel %vm316, %v298, 0
        %v477 = vsel %vm316, %v299, 0
        %v480 = vsel %vm316, %v300, 0
        %v483 = vsel %vm316, %v301, 0
        %v486 = vsel %vm316, %v302, 0
        %v489 = vsel %vm316, %v303, 0
        %v492 = vsel %vm316, %v304, 0
        %v495 = vsel %vm316, %v305, 0
        %v498 = vsel %vm316, %v306, 0
        %v501 = vsel %vm316, %v307, 0
        %v504 = vsel %vm316, %v308, 0
        %v507 = vsel %vm316, %v309, 0
        %509 = vmatpush.msra.mxu0 0.0
        %510 = vmatpush.msra.mxu0 0.0
        %511 = vmatpush.msra.mxu0 0.0
        %512 = vmatpush.msra.mxu0 0.0
        %513 = vmatpush.msra.mxu0 0.0
        %514 = vmatpush.msra.mxu0 0.0
        %515 = vmatpush.msra.mxu0 0.0
        %516 = vmatpush.msra.mxu0 0.0
        %517 = vmatpush.msra.mxu0 0.0
        %518 = vmatpush.msra.mxu0 0.0
        %519 = vmatpush.msra.mxu0 0.0
        %520 = vmatpush.msra.mxu0 0.0
        %521 = vmatpush.msra.mxu0 0.0
        %522 = vmatpush.msra.mxu0 0.0
        %523 = vmatpush.msra.mxu0 %v311
        %524 = vmatpush.msra.mxu0 %v310
        %525 = vmatmul.f32.gmra.mxu0 %v318
        %v526 = vpop.f32.mrf.mxu0
        %v527 = vadd.f32 %v314, %v526
        %528 = vmatmul.f32.gmra.mxu0 %v321
        %v529 = vpop.f32.mrf.mxu0
        %v530 = vadd.f32 %v314, %v529
        %531 = vmatmul.f32.gmra.mxu0 %v324
        %v532 = vpop.f32.mrf.mxu0
        %v533 = vadd.f32 %v314, %v532
        %534 = vmatmul.f32.gmra.mxu0 %v327
        %v535 = vpop.f32.mrf.mxu0
        %v536 = vadd.f32 %v314, %v535
        %537 = vmatmul.f32.gmra.mxu0 %v330
        %v538 = vpop.f32.mrf.mxu0
        %v539 = vadd.f32 %v314, %v538
        %540 = vmatmul.f32.gmra.mxu0 %v333
        %v541 = vpop.f32.mrf.mxu0
        %v542 = vadd.f32 %v314, %v541
        %543 = vmatmul.f32.gmra.mxu0 %v336
        %v544 = vpop.f32.mrf.mxu0
        %v545 = vadd.f32 %v314, %v544
        %546 = vmatmul.f32.gmra.mxu0 %v339
        %v547 = vpop.f32.mrf.mxu0
        %v548 = vadd.f32 %v314, %v547
        %549 = vmatmul.f32.gmra.mxu0 %v342
        %v550 = vpop.f32.mrf.mxu0
        %v551 = vadd.f32 %v314, %v550
        %552 = vmatmul.f32.gmra.mxu0 %v345
        %v553 = vpop.f32.mrf.mxu0
        %v554 = vadd.f32 %v314, %v553
        %555 = vmatmul.f32.gmra.mxu0 %v348
        %v556 = vpop.f32.mrf.mxu0
        %v557 = vadd.f32 %v314, %v556
        %558 = vmatmul.f32.gmra.mxu0 %v351
        %v559 = vpop.f32.mrf.mxu0
        %v560 = vadd.f32 %v314, %v559
        %561 = vmatmul.f32.gmra.mxu0 %v354
        %v562 = vpop.f32.mrf.mxu0
        %v563 = vadd.f32 %v314, %v562
        %564 = vmatmul.f32.gmra.mxu0 %v357
        %v565 = vpop.f32.mrf.mxu0
        %v566 = vadd.f32 %v314, %v565
        %567 = vmatmul.f32.gmra.mxu0 %v360
        %v568 = vpop.f32.mrf.mxu0
        %v569 = vadd.f32 %v314, %v568
        %570 = vmatmul.f32.gmra.mxu0 %v363
        %v571 = vpop.f32.mrf.mxu0
        %v572 = vadd.f32 %v314, %v571
        %573 = vmatmul.f32.gmra.mxu0 %v366
        %v574 = vpop.f32.mrf.mxu0
        %v575 = vadd.f32 %v314, %v574
        %576 = vmatmul.f32.gmra.mxu0 %v369
        %v577 = vpop.f32.mrf.mxu0
        %v578 = vadd.f32 %v314, %v577
        %579 = vmatmul.f32.gmra.mxu0 %v372
        %v580 = vpop.f32.mrf.mxu0
        %v581 = vadd.f32 %v314, %v580
        %582 = vmatmul.f32.gmra.mxu0 %v375
        %v583 = vpop.f32.mrf.mxu0
        %v584 = vadd.f32 %v314, %v583
        %585 = vmatmul.f32.gmra.mxu0 %v378
        %v586 = vpop.f32.mrf.mxu0
        %v587 = vadd.f32 %v314, %v586
        %588 = vmatmul.f32.gmra.mxu0 %v381
        %v589 = vpop.f32.mrf.mxu0
        %v590 = vadd.f32 %v314, %v589
        %591 = vmatmul.f32.gmra.mxu0 %v384
        %v592 = vpop.f32.mrf.mxu0
        %v593 = vadd.f32 %v314, %v592
        %594 = vmatmul.f32.gmra.mxu0 %v387
        %v595 = vpop.f32.mrf.mxu0
        %v596 = vadd.f32 %v314, %v595
        %597 = vmatmul.f32.gmra.mxu0 %v390
        %v598 = vpop.f32.mrf.mxu0
        %v599 = vadd.f32 %v314, %v598
        %600 = vmatmul.f32.gmra.mxu0 %v393
        %v601 = vpop.f32.mrf.mxu0
        %v602 = vadd.f32 %v314, %v601
        %603 = vmatmul.f32.gmra.mxu0 %v396
        %v604 = vpop.f32.mrf.mxu0
        %v605 = vadd.f32 %v314, %v604
        %606 = vmatmul.f32.gmra.mxu0 %v399
        %v607 = vpop.f32.mrf.mxu0
        %v608 = vadd.f32 %v314, %v607
        %609 = vmatmul.f32.gmra.mxu0 %v402
        %v610 = vpop.f32.mrf.mxu0
        %v611 = vadd.f32 %v314, %v610
        %612 = vmatmul.f32.gmra.mxu0 %v405
        %v613 = vpop.f32.mrf.mxu0
        %v614 = vadd.f32 %v314, %v613
        %615 = vmatmul.f32.gmra.mxu0 %v408
        %v616 = vpop.f32.mrf.mxu0
        %v617 = vadd.f32 %v314, %v616
        %618 = vmatmul.f32.gmra.mxu0 %v411
        %v619 = vpop.f32.mrf.mxu0
        %v620 = vadd.f32 %v314, %v619
        %621 = vmatmul.f32.gmra.mxu0 %v414
        %v622 = vpop.f32.mrf.mxu0
        %v623 = vadd.f32 %v314, %v622
        %624 = vmatmul.f32.gmra.mxu0 %v417
        %v625 = vpop.f32.mrf.mxu0
        %v626 = vadd.f32 %v314, %v625
        %627 = vmatmul.f32.gmra.mxu0 %v420
        %v628 = vpop.f32.mrf.mxu0
        %v629 = vadd.f32 %v314, %v628
        %630 = vmatmul.f32.gmra.mxu0 %v423
        %v631 = vpop.f32.mrf.mxu0
        %v632 = vadd.f32 %v314, %v631
        %633 = vmatmul.f32.gmra.mxu0 %v426
        %v634 = vpop.f32.mrf.mxu0
        %v635 = vadd.f32 %v314, %v634
        %636 = vmatmul.f32.gmra.mxu0 %v429
        %v637 = vpop.f32.mrf.mxu0
        %v638 = vadd.f32 %v314, %v637
        %639 = vmatmul.f32.gmra.mxu0 %v432
        %v640 = vpop.f32.mrf.mxu0
        %v641 = vadd.f32 %v314, %v640
        %642 = vmatmul.f32.gmra.mxu0 %v435
        %v643 = vpop.f32.mrf.mxu0
        %v644 = vadd.f32 %v314, %v643
        %645 = vmatmul.f32.gmra.mxu0 %v438
        %v646 = vpop.f32.mrf.mxu0
        %v647 = vadd.f32 %v314, %v646
        %648 = vmatmul.f32.gmra.mxu0 %v441
        %v649 = vpop.f32.mrf.mxu0
        %v650 = vadd.f32 %v314, %v649
        %651 = vmatmul.f32.gmra.mxu0 %v444
        %v652 = vpop.f32.mrf.mxu0
        %v653 = vadd.f32 %v314, %v652
        %654 = vmatmul.f32.gmra.mxu0 %v447
        %v655 = vpop.f32.mrf.mxu0
        %v656 = vadd.f32 %v314, %v655
        %657 = vmatmul.f32.gmra.mxu0 %v450
        %v658 = vpop.f32.mrf.mxu0
        %v659 = vadd.f32 %v314, %v658
        %660 = vmatmul.f32.gmra.mxu0 %v453
        %v661 = vpop.f32.mrf.mxu0
        %v662 = vadd.f32 %v314, %v661
        %663 = vmatmul.f32.gmra.mxu0 %v456
        %v664 = vpop.f32.mrf.mxu0
        %v665 = vadd.f32 %v314, %v664
        %666 = vmatmul.f32.gmra.mxu0 %v459
        %v667 = vpop.f32.mrf.mxu0
        %v668 = vadd.f32 %v314, %v667
        %669 = vmatmul.f32.gmra.mxu0 %v462
        %v670 = vpop.f32.mrf.mxu0
        %v671 = vadd.f32 %v314, %v670
        %672 = vmatmul.f32.gmra.mxu0 %v465
        %v673 = vpop.f32.mrf.mxu0
        %v674 = vadd.f32 %v314, %v673
        %675 = vmatmul.f32.gmra.mxu0 %v468
        %v676 = vpop.f32.mrf.mxu0
        %v677 = vadd.f32 %v314, %v676
        %678 = vmatmul.f32.gmra.mxu0 %v471
        %v679 = vpop.f32.mrf.mxu0
        %v680 = vadd.f32 %v314, %v679
        %681 = vmatmul.f32.gmra.mxu0 %v474
        %v682 = vpop.f32.mrf.mxu0
        %v683 = vadd.f32 %v314, %v682
        %684 = vmatmul.f32.gmra.mxu0 %v477
        %v685 = vpop.f32.mrf.mxu0
        %v686 = vadd.f32 %v314, %v685
        %687 = vmatmul.f32.gmra.mxu0 %v480
        %v688 = vpop.f32.mrf.mxu0
        %v689 = vadd.f32 %v314, %v688
        %690 = vmatmul.f32.gmra.mxu0 %v483
        %v691 = vpop.f32.mrf.mxu0
        %v692 = vadd.f32 %v314, %v691
        %693 = vmatmul.f32.gmra.mxu0 %v486
        %v694 = vpop.f32.mrf.mxu0
        %v695 = vadd.f32 %v314, %v694
        %696 = vmatmul.f32.gmra.mxu0 %v489
        %v697 = vpop.f32.mrf.mxu0
        %v698 = vadd.f32 %v314, %v697
        %699 = vmatmul.f32.gmra.mxu0 %v492
        %v700 = vpop.f32.mrf.mxu0
        %v701 = vadd.f32 %v314, %v700
        %702 = vmatmul.f32.gmra.mxu0 %v495
        %v703 = vpop.f32.mrf.mxu0
        %v704 = vadd.f32 %v314, %v703
        %705 = vmatmul.f32.gmra.mxu0 %v498
        %v706 = vpop.f32.mrf.mxu0
        %v707 = vadd.f32 %v314, %v706
        %708 = vmatmul.f32.gmra.mxu0 %v501
        %v709 = vpop.f32.mrf.mxu0
        %v710 = vadd.f32 %v314, %v709
        %711 = vmatmul.f32.gmra.mxu0 %v504
        %v712 = vpop.f32.mrf.mxu0
        %v713 = vadd.f32 %v314, %v712
        %714 = vmatmul.f32.gmra.mxu0 %v507
        %v715 = vpop.f32.mrf.mxu0
        %v716 = vadd.f32 %v314, %v715
        %717 = vdwg.mxu0
        %v718 = vmax.f32 %v527, 0.0
        %v719 = vmax.f32 %v530, 0.0
        %v720 = vmax.f32 %v533, 0.0
        %v721 = vmax.f32 %v536, 0.0
        %v722 = vmax.f32 %v539, 0.0
        %v723 = vmax.f32 %v542, 0.0
        %v724 = vmax.f32 %v545, 0.0
        %v725 = vmax.f32 %v548, 0.0
        %v726 = vmax.f32 %v551, 0.0
        %v727 = vmax.f32 %v554, 0.0
        %v728 = vmax.f32 %v557, 0.0
        %v729 = vmax.f32 %v560, 0.0
        %v730 = vmax.f32 %v563, 0.0
        %v731 = vmax.f32 %v566, 0.0
        %v732 = vmax.f32 %v569, 0.0
        %v733 = vmax.f32 %v572, 0.0
        %v734 = vmax.f32 %v575, 0.0
        %v735 = vmax.f32 %v578, 0.0
        %v736 = vmax.f32 %v581, 0.0
        %v737 = vmax.f32 %v584, 0.0
        %v738 = vmax.f32 %v587, 0.0
        %v739 = vmax.f32 %v590, 0.0
        %v740 = vmax.f32 %v593, 0.0
        %v741 = vmax.f32 %v596, 0.0
        %v742 = vmax.f32 %v599, 0.0
        %v743 = vmax.f32 %v602, 0.0
        %v744 = vmax.f32 %v605, 0.0
        %v745 = vmax.f32 %v608, 0.0
        %v746 = vmax.f32 %v611, 0.0
        %v747 = vmax.f32 %v614, 0.0
        %v748 = vmax.f32 %v617, 0.0
        %v749 = vmax.f32 %v620, 0.0
        %v750 = vmax.f32 %v623, 0.0
        %v751 = vmax.f32 %v626, 0.0
        %v752 = vmax.f32 %v629, 0.0
        %v753 = vmax.f32 %v632, 0.0
        %v754 = vmax.f32 %v635, 0.0
        %v755 = vmax.f32 %v638, 0.0
        %v756 = vmax.f32 %v641, 0.0
        %v757 = vmax.f32 %v644, 0.0
        %v758 = vmax.f32 %v647, 0.0
        %v759 = vmax.f32 %v650, 0.0
        %v760 = vmax.f32 %v653, 0.0
        %v761 = vmax.f32 %v656, 0.0
        %v762 = vmax.f32 %v659, 0.0
        %v763 = vmax.f32 %v662, 0.0
        %v764 = vmax.f32 %v665, 0.0
        %v765 = vmax.f32 %v668, 0.0
        %v766 = vmax.f32 %v671, 0.0
        %v767 = vmax.f32 %v674, 0.0
        %v768 = vmax.f32 %v677, 0.0
        %v769 = vmax.f32 %v680, 0.0
        %v770 = vmax.f32 %v683, 0.0
        %v771 = vmax.f32 %v686, 0.0
        %v772 = vmax.f32 %v689, 0.0
        %v773 = vmax.f32 %v692, 0.0
        %v774 = vmax.f32 %v695, 0.0
        %v775 = vmax.f32 %v698, 0.0
        %v776 = vmax.f32 %v701, 0.0
        %v777 = vmax.f32 %v704, 0.0
        %v778 = vmax.f32 %v707, 0.0
        %v779 = vmax.f32 %v710, 0.0
        %v780 = vmax.f32 %v713, 0.0
        %v781 = vmax.f32 %v716, 0.0
        %v782 = vld [vmem:[%s3] sm:$0xff]
        %v783 = vld [vmem:[%s3 + $0x8] sm:$0xff]
        %v784 = vld [vmem:[%s3 + $0x10] sm:$0xff]
        %v785 = vld [vmem:[%s3 + $0x18] sm:$0xff]
        %v786 = vld [vmem:[%s4] sm:$0x1]
        %v788 = vperm.slane %v786, 0
        %vm790 = vcmask 261120
        %v792 = vsel %vm790, %v718, 0
        %v795 = vsel %vm790, %v719, 0
        %v798 = vsel %vm790, %v720, 0
        %v801 = vsel %vm790, %v721, 0
        %v804 = vsel %vm790, %v722, 0
        %v807 = vsel %vm790, %v723, 0
        %v810 = vsel %vm790, %v724, 0
        %v813 = vsel %vm790, %v725, 0
        %v816 = vsel %vm790, %v726, 0
        %v819 = vsel %vm790, %v727, 0
        %v822 = vsel %vm790, %v728, 0
        %v825 = vsel %vm790, %v729, 0
        %v828 = vsel %vm790, %v730, 0
        %v831 = vsel %vm790, %v731, 0
        %v834 = vsel %vm790, %v732, 0
        %v837 = vsel %vm790, %v733, 0
        %v840 = vsel %vm790, %v734, 0
        %v843 = vsel %vm790, %v735, 0
        %v846 = vsel %vm790, %v736, 0
        %v849 = vsel %vm790, %v737, 0
        %v852 = vsel %vm790, %v738, 0
        %v855 = vsel %vm790, %v739, 0
        %v858 = vsel %vm790, %v740, 0
        %v861 = vsel %vm790, %v741, 0
        %v864 = vsel %vm790, %v742, 0
        %v867 = vsel %vm790, %v743, 0
        %v870 = vsel %vm790, %v744, 0
        %v873 = vsel %vm790, %v745, 0
        %v876 = vsel %vm790, %v746, 0
        %v879 = vsel %vm790, %v747, 0
        %v882 = vsel %vm790, %v748, 0
        %v885 = vsel %vm790, %v749, 0
        %v888 = vsel %vm790, %v750, 0
        %v891 = vsel %vm790, %v751, 0
        %v894 = vsel %vm790, %v752, 0
        %v897 = vsel %vm790, %v753, 0
        %v900 = vsel %vm790, %v754, 0
        %v903 = vsel %vm790, %v755, 0
        %v906 = vsel %vm790, %v756, 0
        %v909 = vsel %vm790, %v757, 0
        %v912 = vsel %vm790, %v758, 0
        %v915 = vsel %vm790, %v759, 0
        %v918 = vsel %vm790, %v760, 0
        %v921 = vsel %vm790, %v761, 0
        %v924 = vsel %vm790, %v762, 0
        %v927 = vsel %vm790, %v763, 0
        %v930 = vsel %vm790, %v764, 0
        %v933 = vsel %vm790, %v765, 0
        %v936 = vsel %vm790, %v766, 0
        %v939 = vsel %vm790, %v767, 0
        %v942 = vsel %vm790, %v768, 0
        %v945 = vsel %vm790, %v769, 0
        %v948 = vsel %vm790, %v770, 0
        %v951 = vsel %vm790, %v771, 0
        %v954 = vsel %vm790, %v772, 0
        %v957 = vsel %vm790, %v773, 0
        %v960 = vsel %vm790, %v774, 0
        %v963 = vsel %vm790, %v775, 0
        %v966 = vsel %vm790, %v776, 0
        %v969 = vsel %vm790, %v777, 0
        %v972 = vsel %vm790, %v778, 0
        %v975 = vsel %vm790, %v779, 0
        %v978 = vsel %vm790, %v780, 0
        %v981 = vsel %vm790, %v781, 0
        %983 = vmatpush.msra.mxu0 0.0
        %984 = vmatpush.msra.mxu0 0.0
        %985 = vmatpush.msra.mxu0 0.0
        %986 = vmatpush.msra.mxu0 0.0
        %987 = vmatpush.msra.mxu0 0.0
        %988 = vmatpush.msra.mxu0 0.0
        %989 = vmatpush.msra.mxu0 0.0
        %990 = vmatpush.msra.mxu0 0.0
        %991 = vmatpush.msra.mxu0 0.0
        %992 = vmatpush.msra.mxu0 0.0
        %993 = vmatpush.msra.mxu0 0.0
        %994 = vmatpush.msra.mxu0 0.0
        %995 = vmatpush.msra.mxu0 %v785
        %996 = vmatpush.msra.mxu0 %v784
        %997 = vmatpush.msra.mxu0 %v783
        %998 = vmatpush.msra.mxu0 %v782
        %999 = vmatmul.f32.gmra.mxu0 %v792
        %v1000 = vpop.f32.mrf.mxu0
        %v1001 = vadd.f32 %v788, %v1000
        %1002 = vmatmul.f32.gmra.mxu0 %v795
        %v1003 = vpop.f32.mrf.mxu0
        %v1004 = vadd.f32 %v788, %v1003
        %1005 = vmatmul.f32.gmra.mxu0 %v798
        %v1006 = vpop.f32.mrf.mxu0
        %v1007 = vadd.f32 %v788, %v1006
        %1008 = vmatmul.f32.gmra.mxu0 %v801
        %v1009 = vpop.f32.mrf.mxu0
        %v1010 = vadd.f32 %v788, %v1009
        %1011 = vmatmul.f32.gmra.mxu0 %v804
        %v1012 = vpop.f32.mrf.mxu0
        %v1013 = vadd.f32 %v788, %v1012
        %1014 = vmatmul.f32.gmra.mxu0 %v807
        %v1015 = vpop.f32.mrf.mxu0
        %v1016 = vadd.f32 %v788, %v1015
        %1017 = vmatmul.f32.gmra.mxu0 %v810
        %v1018 = vpop.f32.mrf.mxu0
        %v1019 = vadd.f32 %v788, %v1018
        %1020 = vmatmul.f32.gmra.mxu0 %v813
        %v1021 = vpop.f32.mrf.mxu0
        %v1022 = vadd.f32 %v788, %v1021
        %1023 = vmatmul.f32.gmra.mxu0 %v816
        %v1024 = vpop.f32.mrf.mxu0
        %v1025 = vadd.f32 %v788, %v1024
        %1026 = vmatmul.f32.gmra.mxu0 %v819
        %v1027 = vpop.f32.mrf.mxu0
        %v1028 = vadd.f32 %v788, %v1027
        %1029 = vmatmul.f32.gmra.mxu0 %v822
        %v1030 = vpop.f32.mrf.mxu0
        %v1031 = vadd.f32 %v788, %v1030
        %1032 = vmatmul.f32.gmra.mxu0 %v825
        %v1033 = vpop.f32.mrf.mxu0
        %v1034 = vadd.f32 %v788, %v1033
        %1035 = vmatmul.f32.gmra.mxu0 %v828
        %v1036 = vpop.f32.mrf.mxu0
        %v1037 = vadd.f32 %v788, %v1036
        %1038 = vmatmul.f32.gmra.mxu0 %v831
        %v1039 = vpop.f32.mrf.mxu0
        %v1040 = vadd.f32 %v788, %v1039
        %1041 = vmatmul.f32.gmra.mxu0 %v834
        %v1042 = vpop.f32.mrf.mxu0
        %v1043 = vadd.f32 %v788, %v1042
        %1044 = vmatmul.f32.gmra.mxu0 %v837
        %v1045 = vpop.f32.mrf.mxu0
        %v1046 = vadd.f32 %v788, %v1045
        %1047 = vmatmul.f32.gmra.mxu0 %v840
        %v1048 = vpop.f32.mrf.mxu0
        %v1049 = vadd.f32 %v788, %v1048
        %1050 = vmatmul.f32.gmra.mxu0 %v843
        %v1051 = vpop.f32.mrf.mxu0
        %v1052 = vadd.f32 %v788, %v1051
        %1053 = vmatmul.f32.gmra.mxu0 %v846
        %v1054 = vpop.f32.mrf.mxu0
        %v1055 = vadd.f32 %v788, %v1054
        %1056 = vmatmul.f32.gmra.mxu0 %v849
        %v1057 = vpop.f32.mrf.mxu0
        %v1058 = vadd.f32 %v788, %v1057
        %1059 = vmatmul.f32.gmra.mxu0 %v852
        %v1060 = vpop.f32.mrf.mxu0
        %v1061 = vadd.f32 %v788, %v1060
        %1062 = vmatmul.f32.gmra.mxu0 %v855
        %v1063 = vpop.f32.mrf.mxu0
        %v1064 = vadd.f32 %v788, %v1063
        %1065 = vmatmul.f32.gmra.mxu0 %v858
        %v1066 = vpop.f32.mrf.mxu0
        %v1067 = vadd.f32 %v788, %v1066
        %1068 = vmatmul.f32.gmra.mxu0 %v861
        %v1069 = vpop.f32.mrf.mxu0
        %v1070 = vadd.f32 %v788, %v1069
        %1071 = vmatmul.f32.gmra.mxu0 %v864
        %v1072 = vpop.f32.mrf.mxu0
        %v1073 = vadd.f32 %v788, %v1072
        %1074 = vmatmul.f32.gmra.mxu0 %v867
        %v1075 = vpop.f32.mrf.mxu0
        %v1076 = vadd.f32 %v788, %v1075
        %1077 = vmatmul.f32.gmra.mxu0 %v870
        %v1078 = vpop.f32.mrf.mxu0
        %v1079 = vadd.f32 %v788, %v1078
        %1080 = vmatmul.f32.gmra.mxu0 %v873
        %v1081 = vpop.f32.mrf.mxu0
        %v1082 = vadd.f32 %v788, %v1081
        %1083 = vmatmul.f32.gmra.mxu0 %v876
        %v1084 = vpop.f32.mrf.mxu0
        %v1085 = vadd.f32 %v788, %v1084
        %1086 = vmatmul.f32.gmra.mxu0 %v879
        %v1087 = vpop.f32.mrf.mxu0
        %v1088 = vadd.f32 %v788, %v1087
        %1089 = vmatmul.f32.gmra.mxu0 %v882
        %v1090 = vpop.f32.mrf.mxu0
        %v1091 = vadd.f32 %v788, %v1090
        %1092 = vmatmul.f32.gmra.mxu0 %v885
        %v1093 = vpop.f32.mrf.mxu0
        %v1094 = vadd.f32 %v788, %v1093
        %1095 = vmatmul.f32.gmra.mxu0 %v888
        %v1096 = vpop.f32.mrf.mxu0
        %v1097 = vadd.f32 %v788, %v1096
        %1098 = vmatmul.f32.gmra.mxu0 %v891
        %v1099 = vpop.f32.mrf.mxu0
        %v1100 = vadd.f32 %v788, %v1099
        %1101 = vmatmul.f32.gmra.mxu0 %v894
        %v1102 = vpop.f32.mrf.mxu0
        %v1103 = vadd.f32 %v788, %v1102
        %1104 = vmatmul.f32.gmra.mxu0 %v897
        %v1105 = vpop.f32.mrf.mxu0
        %v1106 = vadd.f32 %v788, %v1105
        %1107 = vmatmul.f32.gmra.mxu0 %v900
        %v1108 = vpop.f32.mrf.mxu0
        %v1109 = vadd.f32 %v788, %v1108
        %1110 = vmatmul.f32.gmra.mxu0 %v903
        %v1111 = vpop.f32.mrf.mxu0
        %v1112 = vadd.f32 %v788, %v1111
        %1113 = vmatmul.f32.gmra.mxu0 %v906
        %v1114 = vpop.f32.mrf.mxu0
        %v1115 = vadd.f32 %v788, %v1114
        %1116 = vmatmul.f32.gmra.mxu0 %v909
        %v1117 = vpop.f32.mrf.mxu0
        %v1118 = vadd.f32 %v788, %v1117
        %1119 = vmatmul.f32.gmra.mxu0 %v912
        %v1120 = vpop.f32.mrf.mxu0
        %v1121 = vadd.f32 %v788, %v1120
        %1122 = vmatmul.f32.gmra.mxu0 %v915
        %v1123 = vpop.f32.mrf.mxu0
        %v1124 = vadd.f32 %v788, %v1123
        %1125 = vmatmul.f32.gmra.mxu0 %v918
        %v1126 = vpop.f32.mrf.mxu0
        %v1127 = vadd.f32 %v788, %v1126
        %1128 = vmatmul.f32.gmra.mxu0 %v921
        %v1129 = vpop.f32.mrf.mxu0
        %v1130 = vadd.f32 %v788, %v1129
        %1131 = vmatmul.f32.gmra.mxu0 %v924
        %v1132 = vpop.f32.mrf.mxu0
        %v1133 = vadd.f32 %v788, %v1132
        %1134 = vmatmul.f32.gmra.mxu0 %v927
        %v1135 = vpop.f32.mrf.mxu0
        %v1136 = vadd.f32 %v788, %v1135
        %1137 = vmatmul.f32.gmra.mxu0 %v930
        %v1138 = vpop.f32.mrf.mxu0
        %v1139 = vadd.f32 %v788, %v1138
        %1140 = vmatmul.f32.gmra.mxu0 %v933
        %v1141 = vpop.f32.mrf.mxu0
        %v1142 = vadd.f32 %v788, %v1141
        %1143 = vmatmul.f32.gmra.mxu0 %v936
        %v1144 = vpop.f32.mrf.mxu0
        %v1145 = vadd.f32 %v788, %v1144
        %1146 = vmatmul.f32.gmra.mxu0 %v939
        %v1147 = vpop.f32.mrf.mxu0
        %v1148 = vadd.f32 %v788, %v1147
        %1149 = vmatmul.f32.gmra.mxu0 %v942
        %v1150 = vpop.f32.mrf.mxu0
        %v1151 = vadd.f32 %v788, %v1150
        %1152 = vmatmul.f32.gmra.mxu0 %v945
        %v1153 = vpop.f32.mrf.mxu0
        %v1154 = vadd.f32 %v788, %v1153
        %1155 = vmatmul.f32.gmra.mxu0 %v948
        %v1156 = vpop.f32.mrf.mxu0
        %v1157 = vadd.f32 %v788, %v1156
        %1158 = vmatmul.f32.gmra.mxu0 %v951
        %v1159 = vpop.f32.mrf.mxu0
        %v1160 = vadd.f32 %v788, %v1159
        %1161 = vmatmul.f32.gmra.mxu0 %v954
        %v1162 = vpop.f32.mrf.mxu0
        %v1163 = vadd.f32 %v788, %v1162
        %1164 = vmatmul.f32.gmra.mxu0 %v957
        %v1165 = vpop.f32.mrf.mxu0
        %v1166 = vadd.f32 %v788, %v1165
        %1167 = vmatmul.f32.gmra.mxu0 %v960
        %v1168 = vpop.f32.mrf.mxu0
        %v1169 = vadd.f32 %v788, %v1168
        %1170 = vmatmul.f32.gmra.mxu0 %v963
        %v1171 = vpop.f32.mrf.mxu0
        %v1172 = vadd.f32 %v788, %v1171
        %1173 = vmatmul.f32.gmra.mxu0 %v966
        %v1174 = vpop.f32.mrf.mxu0
        %v1175 = vadd.f32 %v788, %v1174
        %1176 = vmatmul.f32.gmra.mxu0 %v969
        %v1177 = vpop.f32.mrf.mxu0
        %v1178 = vadd.f32 %v788, %v1177
        %1179 = vmatmul.f32.gmra.mxu0 %v972
        %v1180 = vpop.f32.mrf.mxu0
        %v1181 = vadd.f32 %v788, %v1180
        %1182 = vmatmul.f32.gmra.mxu0 %v975
        %v1183 = vpop.f32.mrf.mxu0
        %v1184 = vadd.f32 %v788, %v1183
        %1185 = vmatmul.f32.gmra.mxu0 %v978
        %v1186 = vpop.f32.mrf.mxu0
        %v1187 = vadd.f32 %v788, %v1186
        %1188 = vmatmul.f32.gmra.mxu0 %v981
        %v1189 = vpop.f32.mrf.mxu0
        %v1190 = vadd.f32 %v788, %v1189
        %1191 = vdwg.mxu0
        %vm1192 = vcmask 31744
        %1193 = vst.msk [vmem:[%s226] sm:$0xff] %vm1192, %v1001
        %1194 = vst.msk [vmem:[%s226 + $0x8] sm:$0xff] %vm1192, %v1004
        %1195 = vst.msk [vmem:[%s226 + $0x10] sm:$0xff] %vm1192, %v1007
        %1196 = vst.msk [vmem:[%s226 + $0x18] sm:$0xff] %vm1192, %v1010
        %1197 = vst.msk [vmem:[%s226 + $0x20] sm:$0xff] %vm1192, %v1013
        %1198 = vst.msk [vmem:[%s226 + $0x28] sm:$0xff] %vm1192, %v1016
        %1199 = vst.msk [vmem:[%s226 + $0x30] sm:$0xff] %vm1192, %v1019
        %1200 = vst.msk [vmem:[%s226 + $0x38] sm:$0xff] %vm1192, %v1022
        %1201 = vst.msk [vmem:[%s226 + $0x40] sm:$0xff] %vm1192, %v1025
        %1202 = vst.msk [vmem:[%s226 + $0x48] sm:$0xff] %vm1192, %v1028
        %1203 = vst.msk [vmem:[%s226 + $0x50] sm:$0xff] %vm1192, %v1031
        %1204 = vst.msk [vmem:[%s226 + $0x58] sm:$0xff] %vm1192, %v1034
        %1205 = vst.msk [vmem:[%s226 + $0x60] sm:$0xff] %vm1192, %v1037
        %1206 = vst.msk [vmem:[%s226 + $0x68] sm:$0xff] %vm1192, %v1040
        %1207 = vst.msk [vmem:[%s226 + $0x70] sm:$0xff] %vm1192, %v1043
        %1208 = vst.msk [vmem:[%s226 + $0x78] sm:$0xff] %vm1192, %v1046
        %1209 = vst.msk [vmem:[%s226 + $0x80] sm:$0xff] %vm1192, %v1049
        %1210 = vst.msk [vmem:[%s226 + $0x88] sm:$0xff] %vm1192, %v1052
        %1211 = vst.msk [vmem:[%s226 + $0x90] sm:$0xff] %vm1192, %v1055
        %1212 = vst.msk [vmem:[%s226 + $0x98] sm:$0xff] %vm1192, %v1058
        %1213 = vst.msk [vmem:[%s226 + $0xa0] sm:$0xff] %vm1192, %v1061
        %1214 = vst.msk [vmem:[%s226 + $0xa8] sm:$0xff] %vm1192, %v1064
        %1215 = vst.msk [vmem:[%s226 + $0xb0] sm:$0xff] %vm1192, %v1067
        %1216 = vst.msk [vmem:[%s226 + $0xb8] sm:$0xff] %vm1192, %v1070
        %1217 = vst.msk [vmem:[%s226 + $0xc0] sm:$0xff] %vm1192, %v1073
        %1218 = vst.msk [vmem:[%s226 + $0xc8] sm:$0xff] %vm1192, %v1076
        %1219 = vst.msk [vmem:[%s226 + $0xd0] sm:$0xff] %vm1192, %v1079
        %1220 = vst.msk [vmem:[%s226 + $0xd8] sm:$0xff] %vm1192, %v1082
        %1221 = vst.msk [vmem:[%s226 + $0xe0] sm:$0xff] %vm1192, %v1085
        %1222 = vst.msk [vmem:[%s226 + $0xe8] sm:$0xff] %vm1192, %v1088
        %1223 = vst.msk [vmem:[%s226 + $0xf0] sm:$0xff] %vm1192, %v1091
        %1224 = vst.msk [vmem:[%s226 + $0xf8] sm:$0xff] %vm1192, %v1094
        %1225 = vst.msk [vmem:[%s226 + $0x100] sm:$0xff] %vm1192, %v1097
        %1226 = vst.msk [vmem:[%s226 + $0x108] sm:$0xff] %vm1192, %v1100
        %1227 = vst.msk [vmem:[%s226 + $0x110] sm:$0xff] %vm1192, %v1103
        %1228 = vst.msk [vmem:[%s226 + $0x118] sm:$0xff] %vm1192, %v1106
        %1229 = vst.msk [vmem:[%s226 + $0x120] sm:$0xff] %vm1192, %v1109
        %1230 = vst.msk [vmem:[%s226 + $0x128] sm:$0xff] %vm1192, %v1112
        %1231 = vst.msk [vmem:[%s226 + $0x130] sm:$0xff] %vm1192, %v1115
        %1232 = vst.msk [vmem:[%s226 + $0x138] sm:$0xff] %vm1192, %v1118
        %1233 = vst.msk [vmem:[%s226 + $0x140] sm:$0xff] %vm1192, %v1121
        %1234 = vst.msk [vmem:[%s226 + $0x148] sm:$0xff] %vm1192, %v1124
        %1235 = vst.msk [vmem:[%s226 + $0x150] sm:$0xff] %vm1192, %v1127
        %1236 = vst.msk [vmem:[%s226 + $0x158] sm:$0xff] %vm1192, %v1130
        %1237 = vst.msk [vmem:[%s226 + $0x160] sm:$0xff] %vm1192, %v1133
        %1238 = vst.msk [vmem:[%s226 + $0x168] sm:$0xff] %vm1192, %v1136
        %1239 = vst.msk [vmem:[%s226 + $0x170] sm:$0xff] %vm1192, %v1139
        %1240 = vst.msk [vmem:[%s226 + $0x178] sm:$0xff] %vm1192, %v1142
        %1241 = vst.msk [vmem:[%s226 + $0x180] sm:$0xff] %vm1192, %v1145
        %1242 = vst.msk [vmem:[%s226 + $0x188] sm:$0xff] %vm1192, %v1148
        %1243 = vst.msk [vmem:[%s226 + $0x190] sm:$0xff] %vm1192, %v1151
        %1244 = vst.msk [vmem:[%s226 + $0x198] sm:$0xff] %vm1192, %v1154
        %1245 = vst.msk [vmem:[%s226 + $0x1a0] sm:$0xff] %vm1192, %v1157
        %1246 = vst.msk [vmem:[%s226 + $0x1a8] sm:$0xff] %vm1192, %v1160
        %1247 = vst.msk [vmem:[%s226 + $0x1b0] sm:$0xff] %vm1192, %v1163
        %1248 = vst.msk [vmem:[%s226 + $0x1b8] sm:$0xff] %vm1192, %v1166
        %1249 = vst.msk [vmem:[%s226 + $0x1c0] sm:$0xff] %vm1192, %v1169
        %1250 = vst.msk [vmem:[%s226 + $0x1c8] sm:$0xff] %vm1192, %v1172
        %1251 = vst.msk [vmem:[%s226 + $0x1d0] sm:$0xff] %vm1192, %v1175
        %1252 = vst.msk [vmem:[%s226 + $0x1d8] sm:$0xff] %vm1192, %v1178
        %1253 = vst.msk [vmem:[%s226 + $0x1e0] sm:$0xff] %vm1192, %v1181
        %1254 = vst.msk [vmem:[%s226 + $0x1e8] sm:$0xff] %vm1192, %v1184
        %1255 = vst.msk [vmem:[%s226 + $0x1f0] sm:$0xff] %vm1192, %v1187
        %1256 = vst.msk [vmem:[%s226 + $0x1f8] sm:$0xff] %vm1192, %v1190
        %s1257 = sand.u32 %s134, 1
        %s1258 = sand.u32 %s134, 1
        %s1259 = smul.addr %s1258, 512
        %s1260 = scalar_lea.vmem [#allocation2], %s1259
        // Predicated region
        $region41: #{tpu_custom_call.1} parent=39 // pred_check
          %p1261 = pneg %p144
        $region42: #{tpu_custom_call.1} parent=39 // pred_check_branch
          %1263 = sbr.rel (%p1261) target = $region44
        $region43: #{tpu_custom_call.1} parent=39 // pred_region
          %s1264 = smul.u32 64, %s16
          %s1265 = ssub.s32 132, %s1264
          %p1266 = scmp.lt.s32.totalorder %s1265, 64
          %s1267 = scalar_select %p1266, %s1265, 64
          %s1268 = smul.u32 8, %s1267
          %p1269 = scmp.ne.s32.totalorder 0, %s1268
          %s1270 = smul.addr %s1264, 8
          %s1271 = scalar_lea.vmem %s5, %s1270
          // Predicated region
          $region45: #{tpu_custom_call.1} parent=43 // pred_check
            %p1272 = pneg %p1269
          $region46: #{tpu_custom_call.1} parent=43 // pred_check_branch
            %1274 = sbr.rel (%p1272) target = $region48
          $region47: #{tpu_custom_call.1} parent=43 // pred_region
            // Predicated region
            $region49: #{tpu_custom_call.1} parent=47 // pred_check
              _
            $region50: #{tpu_custom_call.1} parent=47 // pred_check_branch
              %1276 = sbr.rel (0) target = $region52
            $region51: #{tpu_custom_call.1} parent=47 // pred_region
              // Predicated region
              $region71: #{tpu_custom_call.1} parent=51 // pred_check
                _
              $region72: #{tpu_custom_call.1} parent=51 // pred_check_branch
                %1388 = sbr.rel (0) target = $region74
              $region73: #{tpu_custom_call.1} parent=51 // pred_region
                %s1389 = sshrl.u32 %s1267, 5
                // While loop
                $region75: #{tpu_custom_call.1} parent=73 // loop_pre_header
                  _
                $region76: #{tpu_custom_call.1} parent=73 // loop_header
                  %s1391 = sphi 0, %s1393
                  %p1392 = scmp.ge.s32.totalorder %s1391, %s1389
                  %s1396 = sphi 0, %s1465
                  %s1397 = sphi %s1260, %s1468
                  %s1398 = sphi %s1271, %s1469
                $region77: #{tpu_custom_call.1} parent=73 // loop_header_branch
                  %1395 = sbr.rel (%p1392) target = $region81
                $region78: #{tpu_custom_call.1} parent=73 // loop_body
                  %v1399 = vld [vmem:[%s1397] sm:$0xff]
                  %1400 = vst [vmem:[%s1398] sm:$0xff] %v1399
                  %v1401 = vld [vmem:[%s1397 + $0x8] sm:$0xff]
                  %1402 = vst [vmem:[%s1398 + $0x8] sm:$0xff] %v1401
                  %v1403 = vld [vmem:[%s1397 + $0x10] sm:$0xff]
                  %1404 = vst [vmem:[%s1398 + $0x10] sm:$0xff] %v1403
                  %v1405 = vld [vmem:[%s1397 + $0x18] sm:$0xff]
                  %1406 = vst [vmem:[%s1398 + $0x18] sm:$0xff] %v1405
                  %v1407 = vld [vmem:[%s1397 + $0x20] sm:$0xff]
                  %1408 = vst [vmem:[%s1398 + $0x20] sm:$0xff] %v1407
                  %v1409 = vld [vmem:[%s1397 + $0x28] sm:$0xff]
                  %1410 = vst [vmem:[%s1398 + $0x28] sm:$0xff] %v1409
                  %v1411 = vld [vmem:[%s1397 + $0x30] sm:$0xff]
                  %1412 = vst [vmem:[%s1398 + $0x30] sm:$0xff] %v1411
                  %v1413 = vld [vmem:[%s1397 + $0x38] sm:$0xff]
                  %1414 = vst [vmem:[%s1398 + $0x38] sm:$0xff] %v1413
                  %v1415 = vld [vmem:[%s1397 + $0x40] sm:$0xff]
                  %1416 = vst [vmem:[%s1398 + $0x40] sm:$0xff] %v1415
                  %v1417 = vld [vmem:[%s1397 + $0x48] sm:$0xff]
                  %1418 = vst [vmem:[%s1398 + $0x48] sm:$0xff] %v1417
                  %v1419 = vld [vmem:[%s1397 + $0x50] sm:$0xff]
                  %1420 = vst [vmem:[%s1398 + $0x50] sm:$0xff] %v1419
                  %v1421 = vld [vmem:[%s1397 + $0x58] sm:$0xff]
                  %1422 = vst [vmem:[%s1398 + $0x58] sm:$0xff] %v1421
                  %v1423 = vld [vmem:[%s1397 + $0x60] sm:$0xff]
                  %1424 = vst [vmem:[%s1398 + $0x60] sm:$0xff] %v1423
                  %v1425 = vld [vmem:[%s1397 + $0x68] sm:$0xff]
                  %1426 = vst [vmem:[%s1398 + $0x68] sm:$0xff] %v1425
                  %v1427 = vld [vmem:[%s1397 + $0x70] sm:$0xff]
                  %1428 = vst [vmem:[%s1398 + $0x70] sm:$0xff] %v1427
                  %v1429 = vld [vmem:[%s1397 + $0x78] sm:$0xff]
                  %1430 = vst [vmem:[%s1398 + $0x78] sm:$0xff] %v1429
                  %v1431 = vld [vmem:[%s1397 + $0x80] sm:$0xff]
                  %1432 = vst [vmem:[%s1398 + $0x80] sm:$0xff] %v1431
                  %v1433 = vld [vmem:[%s1397 + $0x88] sm:$0xff]
                  %1434 = vst [vmem:[%s1398 + $0x88] sm:$0xff] %v1433
                  %v1435 = vld [vmem:[%s1397 + $0x90] sm:$0xff]
                  %1436 = vst [vmem:[%s1398 + $0x90] sm:$0xff] %v1435
                  %v1437 = vld [vmem:[%s1397 + $0x98] sm:$0xff]
                  %1438 = vst [vmem:[%s1398 + $0x98] sm:$0xff] %v1437
                  %v1439 = vld [vmem:[%s1397 + $0xa0] sm:$0xff]
                  %1440 = vst [vmem:[%s1398 + $0xa0] sm:$0xff] %v1439
                  %v1441 = vld [vmem:[%s1397 + $0xa8] sm:$0xff]
                  %1442 = vst [vmem:[%s1398 + $0xa8] sm:$0xff] %v1441
                  %v1443 = vld [vmem:[%s1397 + $0xb0] sm:$0xff]
                  %1444 = vst [vmem:[%s1398 + $0xb0] sm:$0xff] %v1443
                  %v1445 = vld [vmem:[%s1397 + $0xb8] sm:$0xff]
                  %1446 = vst [vmem:[%s1398 + $0xb8] sm:$0xff] %v1445
                  %v1447 = vld [vmem:[%s1397 + $0xc0] sm:$0xff]
                  %1448 = vst [vmem:[%s1398 + $0xc0] sm:$0xff] %v1447
                  %v1449 = vld [vmem:[%s1397 + $0xc8] sm:$0xff]
                  %1450 = vst [vmem:[%s1398 + $0xc8] sm:$0xff] %v1449
                  %v1451 = vld [vmem:[%s1397 + $0xd0] sm:$0xff]
                  %1452 = vst [vmem:[%s1398 + $0xd0] sm:$0xff] %v1451
                  %v1453 = vld [vmem:[%s1397 + $0xd8] sm:$0xff]
                  %1454 = vst [vmem:[%s1398 + $0xd8] sm:$0xff] %v1453
                  %v1455 = vld [vmem:[%s1397 + $0xe0] sm:$0xff]
                  %1456 = vst [vmem:[%s1398 + $0xe0] sm:$0xff] %v1455
                  %v1457 = vld [vmem:[%s1397 + $0xe8] sm:$0xff]
                  %1458 = vst [vmem:[%s1398 + $0xe8] sm:$0xff] %v1457
                  %v1459 = vld [vmem:[%s1397 + $0xf0] sm:$0xff]
                  %1460 = vst [vmem:[%s1398 + $0xf0] sm:$0xff] %v1459
                  %v1461 = vld [vmem:[%s1397 + $0xf8] sm:$0xff]
                  %1462 = vst [vmem:[%s1398 + $0xf8] sm:$0xff] %v1461
                  %s1463 = sadd.s32 1, %s1396
                  %p1464 = scmp.ge.s32.totalorder %s1463, %s1389
                  %s1465 = scalar_select %p1464, 0, %s1463
                  %s1466 = smul.u32 %s1465, 256
                  %s1467 = smul.u32 %s1465, 256
                  %s1468 = scalar_lea.vmem %s1260, %s1466 [#allocation2]
                  %s1469 = scalar_lea.vmem %s1271, %s1467
                $region79: #{tpu_custom_call.1} parent=73 // loop_footer
                  %s1393 = sadd.s32 %s1391, 1
                $region80: #{tpu_custom_call.1} parent=73 // loop_footer_branch
                  %1390 = sbr.rel target = $region76
                $region81: #{tpu_custom_call.1} parent=73 // loop_exit
                  _
                %s1470 = sshrl.u32 %s1267, 5
                %s1471 = sand.u32 %s1267, 31
                %s1472 = smul.u32 %s1470, 32
                %s1473 = smul.u32 8, %s1472
                %s1474 = scalar_lea.vmem %s1260, %s1473 [#allocation2]
                %s1475 = smul.u32 8, %s1472
                %s1476 = scalar_lea.vmem %s1271, %s1475
                // While loop
                $region82: #{tpu_custom_call.1} parent=73 // loop_pre_header
                  _
                $region83: #{tpu_custom_call.1} parent=73 // loop_header
                  %s1478 = sphi 0, %s1480
                  %p1479 = scmp.ge.s32.totalorder %s1478, %s1471
                  %s1483 = sphi 0, %s1490
                  %s1484 = sphi %s1474, %s1493
                  %s1485 = sphi %s1476, %s1494
                $region84: #{tpu_custom_call.1} parent=73 // loop_header_branch
                  %1482 = sbr.rel (%p1479) target = $region88
                $region85: #{tpu_custom_call.1} parent=73 // loop_body
                  %v1486 = vld [vmem:[%s1484] sm:$0xff]
                  %1487 = vst [vmem:[%s1485] sm:$0xff] %v1486
                  %s1488 = sadd.s32 1, %s1483
                  %p1489 = scmp.ge.s32.totalorder %s1488, %s1471
                  %s1490 = scalar_select %p1489, 0, %s1488
                  %s1491 = smul.u32 %s1490, 8
                  %s1492 = smul.u32 %s1490, 8
                  %s1493 = scalar_lea.vmem %s1474, %s1491 [#allocation2]
                  %s1494 = scalar_lea.vmem %s1476, %s1492
                $region86: #{tpu_custom_call.1} parent=73 // loop_footer
                  %s1480 = sadd.s32 %s1478, 1
                $region87: #{tpu_custom_call.1} parent=73 // loop_footer_branch
                  %1477 = sbr.rel target = $region83
                $region88: #{tpu_custom_call.1} parent=73 // loop_exit
                  _
              $region74: #{tpu_custom_call.1} parent=51 // pred_fallthru
                _
              // Predicated region
              $region89: #{tpu_custom_call.1} parent=51 // pred_check
                _
              $region90: #{tpu_custom_call.1} parent=51 // pred_check_branch
                %1496 = sbr.rel target = $region92
              $region91: #{tpu_custom_call.1} parent=51 // pred_region
                _
              $region92: #{tpu_custom_call.1} parent=51 // pred_fallthru
                _
            $region52: #{tpu_custom_call.1} parent=47 // pred_fallthru
              _
            // Predicated region
            $region53: #{tpu_custom_call.1} parent=47 // pred_check
              _
            $region54: #{tpu_custom_call.1} parent=47 // pred_check_branch
              %1278 = sbr.rel target = $region56
            $region55: #{tpu_custom_call.1} parent=47 // pred_region
              %s1280 = ssub.s32 256, 1
              %s1281 = sshrl.u32 %s1267, 5
              // While loop
              $region57: #{tpu_custom_call.1} parent=55 // loop_pre_header
                _
              $region58: #{tpu_custom_call.1} parent=55 // loop_header
                %s1283 = sphi 0, %s1285
                %p1284 = scmp.ge.s32.totalorder %s1283, %s1281
                %s1288 = sphi 0, %s1357
                %s1289 = sphi %s1260, %s1360
                %s1290 = sphi %s1271, %s1361
              $region59: #{tpu_custom_call.1} parent=55 // loop_header_branch
                %1287 = sbr.rel (%p1284) target = $region63
              $region60: #{tpu_custom_call.1} parent=55 // loop_body
                %v1291 = vld [vmem:[%s1289] sm:%s1280]
                %1292 = vst [vmem:[%s1290] sm:%s1280] %v1291
                %v1293 = vld [vmem:[%s1289 + $0x8] sm:%s1280]
                %1294 = vst [vmem:[%s1290 + $0x8] sm:%s1280] %v1293
                %v1295 = vld [vmem:[%s1289 + $0x10] sm:%s1280]
                %1296 = vst [vmem:[%s1290 + $0x10] sm:%s1280] %v1295
                %v1297 = vld [vmem:[%s1289 + $0x18] sm:%s1280]
                %1298 = vst [vmem:[%s1290 + $0x18] sm:%s1280] %v1297
                %v1299 = vld [vmem:[%s1289 + $0x20] sm:%s1280]
                %1300 = vst [vmem:[%s1290 + $0x20] sm:%s1280] %v1299
                %v1301 = vld [vmem:[%s1289 + $0x28] sm:%s1280]
                %1302 = vst [vmem:[%s1290 + $0x28] sm:%s1280] %v1301
                %v1303 = vld [vmem:[%s1289 + $0x30] sm:%s1280]
                %1304 = vst [vmem:[%s1290 + $0x30] sm:%s1280] %v1303
                %v1305 = vld [vmem:[%s1289 + $0x38] sm:%s1280]
                %1306 = vst [vmem:[%s1290 + $0x38] sm:%s1280] %v1305
                %v1307 = vld [vmem:[%s1289 + $0x40] sm:%s1280]
                %1308 = vst [vmem:[%s1290 + $0x40] sm:%s1280] %v1307
                %v1309 = vld [vmem:[%s1289 + $0x48] sm:%s1280]
                %1310 = vst [vmem:[%s1290 + $0x48] sm:%s1280] %v1309
                %v1311 = vld [vmem:[%s1289 + $0x50] sm:%s1280]
                %1312 = vst [vmem:[%s1290 + $0x50] sm:%s1280] %v1311
                %v1313 = vld [vmem:[%s1289 + $0x58] sm:%s1280]
                %1314 = vst [vmem:[%s1290 + $0x58] sm:%s1280] %v1313
                %v1315 = vld [vmem:[%s1289 + $0x60] sm:%s1280]
                %1316 = vst [vmem:[%s1290 + $0x60] sm:%s1280] %v1315
                %v1317 = vld [vmem:[%s1289 + $0x68] sm:%s1280]
                %1318 = vst [vmem:[%s1290 + $0x68] sm:%s1280] %v1317
                %v1319 = vld [vmem:[%s1289 + $0x70] sm:%s1280]
                %1320 = vst [vmem:[%s1290 + $0x70] sm:%s1280] %v1319
                %v1321 = vld [vmem:[%s1289 + $0x78] sm:%s1280]
                %1322 = vst [vmem:[%s1290 + $0x78] sm:%s1280] %v1321
                %v1323 = vld [vmem:[%s1289 + $0x80] sm:%s1280]
                %1324 = vst [vmem:[%s1290 + $0x80] sm:%s1280] %v1323
                %v1325 = vld [vmem:[%s1289 + $0x88] sm:%s1280]
                %1326 = vst [vmem:[%s1290 + $0x88] sm:%s1280] %v1325
                %v1327 = vld [vmem:[%s1289 + $0x90] sm:%s1280]
                %1328 = vst [vmem:[%s1290 + $0x90] sm:%s1280] %v1327
                %v1329 = vld [vmem:[%s1289 + $0x98] sm:%s1280]
                %1330 = vst [vmem:[%s1290 + $0x98] sm:%s1280] %v1329
                %v1331 = vld [vmem:[%s1289 + $0xa0] sm:%s1280]
                %1332 = vst [vmem:[%s1290 + $0xa0] sm:%s1280] %v1331
                %v1333 = vld [vmem:[%s1289 + $0xa8] sm:%s1280]
                %1334 = vst [vmem:[%s1290 + $0xa8] sm:%s1280] %v1333
                %v1335 = vld [vmem:[%s1289 + $0xb0] sm:%s1280]
                %1336 = vst [vmem:[%s1290 + $0xb0] sm:%s1280] %v1335
                %v1337 = vld [vmem:[%s1289 + $0xb8] sm:%s1280]
                %1338 = vst [vmem:[%s1290 + $0xb8] sm:%s1280] %v1337
                %v1339 = vld [vmem:[%s1289 + $0xc0] sm:%s1280]
                %1340 = vst [vmem:[%s1290 + $0xc0] sm:%s1280] %v1339
                %v1341 = vld [vmem:[%s1289 + $0xc8] sm:%s1280]
                %1342 = vst [vmem:[%s1290 + $0xc8] sm:%s1280] %v1341
                %v1343 = vld [vmem:[%s1289 + $0xd0] sm:%s1280]
                %1344 = vst [vmem:[%s1290 + $0xd0] sm:%s1280] %v1343
                %v1345 = vld [vmem:[%s1289 + $0xd8] sm:%s1280]
                %1346 = vst [vmem:[%s1290 + $0xd8] sm:%s1280] %v1345
                %v1347 = vld [vmem:[%s1289 + $0xe0] sm:%s1280]
                %1348 = vst [vmem:[%s1290 + $0xe0] sm:%s1280] %v1347
                %v1349 = vld [vmem:[%s1289 + $0xe8] sm:%s1280]
                %1350 = vst [vmem:[%s1290 + $0xe8] sm:%s1280] %v1349
                %v1351 = vld [vmem:[%s1289 + $0xf0] sm:%s1280]
                %1352 = vst [vmem:[%s1290 + $0xf0] sm:%s1280] %v1351
                %v1353 = vld [vmem:[%s1289 + $0xf8] sm:%s1280]
                %1354 = vst [vmem:[%s1290 + $0xf8] sm:%s1280] %v1353
                %s1355 = sadd.s32 1, %s1288
                %p1356 = scmp.ge.s32.totalorder %s1355, %s1281
                %s1357 = scalar_select %p1356, 0, %s1355
                %s1358 = smul.u32 %s1357, 256
                %s1359 = smul.u32 %s1357, 256
                %s1360 = scalar_lea.vmem %s1260, %s1358 [#allocation2]
                %s1361 = scalar_lea.vmem %s1271, %s1359
              $region61: #{tpu_custom_call.1} parent=55 // loop_footer
                %s1285 = sadd.s32 %s1283, 1
              $region62: #{tpu_custom_call.1} parent=55 // loop_footer_branch
                %1282 = sbr.rel target = $region58
              $region63: #{tpu_custom_call.1} parent=55 // loop_exit
                _
              %s1362 = sshrl.u32 %s1267, 5
              %s1363 = sand.u32 %s1267, 31
              %s1364 = smul.u32 %s1362, 32
              %s1365 = smul.u32 8, %s1364
              %s1366 = scalar_lea.vmem %s1260, %s1365 [#allocation2]
              %s1367 = smul.u32 8, %s1364
              %s1368 = scalar_lea.vmem %s1271, %s1367
              // While loop
              $region64: #{tpu_custom_call.1} parent=55 // loop_pre_header
                _
              $region65: #{tpu_custom_call.1} parent=55 // loop_header
                %s1370 = sphi 0, %s1372
                %p1371 = scmp.ge.s32.totalorder %s1370, %s1363
                %s1375 = sphi 0, %s1382
                %s1376 = sphi %s1366, %s1385
                %s1377 = sphi %s1368, %s1386
              $region66: #{tpu_custom_call.1} parent=55 // loop_header_branch
                %1374 = sbr.rel (%p1371) target = $region70
              $region67: #{tpu_custom_call.1} parent=55 // loop_body
                %v1378 = vld [vmem:[%s1376] sm:%s1280]
                %1379 = vst [vmem:[%s1377] sm:%s1280] %v1378
                %s1380 = sadd.s32 1, %s1375
                %p1381 = scmp.ge.s32.totalorder %s1380, %s1363
                %s1382 = scalar_select %p1381, 0, %s1380
                %s1383 = smul.u32 %s1382, 8
                %s1384 = smul.u32 %s1382, 8
                %s1385 = scalar_lea.vmem %s1366, %s1383 [#allocation2]
                %s1386 = scalar_lea.vmem %s1368, %s1384
              $region68: #{tpu_custom_call.1} parent=55 // loop_footer
                %s1372 = sadd.s32 %s1370, 1
              $region69: #{tpu_custom_call.1} parent=55 // loop_footer_branch
                %1369 = sbr.rel target = $region65
              $region70: #{tpu_custom_call.1} parent=55 // loop_exit
                _
            $region56: #{tpu_custom_call.1} parent=47 // pred_fallthru
              _
          $region48: #{tpu_custom_call.1} parent=43 // pred_fallthru
            _
          %1497 = vnop
        $region44: #{tpu_custom_call.1} parent=39 // pred_fallthru
          _
      $region40: #{tpu_custom_call.1} parent=5 // pred_fallthru
        _
      %p1498 = scmp.le.s32.totalorder 2, %s11
      // Predicated region
      $region93: #{tpu_custom_call.1} parent=5 // pred_check
        %p1499 = pneg %p1498
      $region94: #{tpu_custom_call.1} parent=5 // pred_check_branch
        %1501 = sbr.rel (%p1499) target = $region96
      $region95: #{tpu_custom_call.1} parent=5 // pred_region
        %s1502 = ssub.s32 %s11, 2
        // Predicated region
        $region97: #{tpu_custom_call.1} parent=95 // pred_check
          %p1503 = pneg %p150
        $region98: #{tpu_custom_call.1} parent=95 // pred_check_branch
          %1505 = sbr.rel (%p1503) target = $region100
        $region99: #{tpu_custom_call.1} parent=95 // pred_region
          %s1506 = sand.u32 %s135, 1
          %s1507 = sand.u32 %s135, 1
          %s1508 = smul.addr %s1507, 512
          %s1509 = scalar_lea.vmem [#allocation2], %s1508
        $region100: #{tpu_custom_call.1} parent=95 // pred_fallthru
          _
      $region96: #{tpu_custom_call.1} parent=5 // pred_fallthru
        _
    $region6: #{tpu_custom_call.1} parent=1 // loop_footer
      %s15 = sadd.s32 1, %s11
    $region7: #{tpu_custom_call.1} parent=1 // loop_footer_branch
      %10 = sbr.rel target = $region3
    $region8: #{tpu_custom_call.1} parent=1 // loop_exit
      _

</llo_original>
